<compile_context>
chip_gen: v7x
topology: tpu7x:2x2x1
jax: 0.10.0
libtpu: 0.0.40
codegen_flags: <defaults>
</compile_context>

<pallas_src>
import jax
import jax.numpy as jnp
from jax import lax
from jax.experimental import pallas as pl
from jax.experimental.pallas import tpu as pltpu


def _round_up(x, m):
    return ((x + m - 1) // m) * m


def _value_head_kernel(x_ref, w_ref, b_ref, o_ref):
    # x_ref: [TM, H]   w_ref: [N, H]   b_ref: [N, 1]   o_ref: [N, TM]
    # Contract on H with the PyTorch-layout weight [N, H] as the LHS so the
    # result comes out [N, TM]: lane-dense along the streamed M axis, giving
    # full-lane stores and tiny output VMEM buffers (vs. (TM, 1) masked stores).
    y = lax.dot_general(
        w_ref[...], x_ref[...],
        dimension_numbers=(((1,), (1,)), ((), ())),
        preferred_element_type=jnp.float32,
    )
    y = y + b_ref[...].astype(jnp.float32)          # [N, 1] broadcast over TM cols
    o_ref[...] = jnp.tanh(y).astype(o_ref.dtype)    # tanh on EUP, then downcast


def value_head_forward(hidden_states, weight, bias, *,
                       tm=None,
                       tile_budget_bytes=8 * 1024 * 1024,
                       vmem_limit_bytes=32 * 1024 * 1024):
    """hidden_states: [B, S, H] (f32 or bf16 — dtype is passed through)
       weight:        [num_labels, H]  (PyTorch nn.Linear convention)
       bias:          [num_labels]
       returns:       [B, S, num_labels] in hidden_states.dtype
    """
    B, S, H = hidden_states.shape
    N = weight.shape[0]
    M = B * S
    dtype = hidden_states.dtype
    itemsize = jnp.dtype(dtype).itemsize

    x = hidden_states.reshape(M, H)
    b = bias.reshape(N, 1)

    # --- M-tile selection (bytes-based, generation-safe) --------------------
    # Per tile we hold an x slab [tm, H] plus an output slab [N, tm], both
    # double-buffered. ~8 MiB of x per buffer amortizes the ~0.35 us/grid-step
    # overhead to <15% even at v7x's 3.2 TB/s while keeping total VMEM use
    # comfortably inside the 32 MiB scoped default on all generations.
    if tm is None:
        per_row_bytes = H * itemsize + max(N, 8) * itemsize
        tm = tile_budget_bytes // per_row_bytes
        # Megacore balance (v7x): keep at least 2 tiles so both TensorCores
        # get work; neutral on v5e/v6e (single TC).
        tm = min(tm, _round_up(pl.cdiv(M, 2), 128))
    # Multiple of 128 keeps the output block lane-aligned and satisfies the
    # sublane tile for every dtype (8 f32 / 16 bf16 / 32 int8-fp8).
    tm = max(128, (tm // 128) * 128)

    num_tiles = pl.cdiv(M, tm)
    m_slab = num_tiles * tm

    # Pad rows only when a single tile is wider than all of M (tiny-M case;
    # negligible cost). For M >= tm the ragged last tile is left to Pallas:
    # OOB reads are garbage but tanh-bounded and those columns are dropped
    # below — no full [M, H] jnp.pad / extra HBM pass on the hot path.
    if M < tm:
        x = jnp.pad(x, ((0, tm - M), (0, 0)))

    out = pl.pallas_call(
        _value_head_kernel,
        out_shape=jax.ShapeDtypeStruct((N, m_slab), dtype),
        grid_spec=pltpu.PrefetchScalarGridSpec(
            num_scalar_prefetch=0,
            grid=(num_tiles,),
            in_specs=[
                pl.BlockSpec((tm, H), lambda i: (i, 0)),   # streamed, double-buffered x
                pl.BlockSpec((N, H), lambda i: (0, 0)),    # VMEM-resident weight (tiny)
                pl.BlockSpec((N, 1), lambda i: (0, 0)),    # VMEM-resident bias (tiny)
            ],
            out_specs=pl.BlockSpec((N, tm), lambda i: (0, i)),  # lane-dense output slab
        ),
        compiler_params=pltpu.CompilerParams(
            dimension_semantics=("parallel",),   # independent M tiles -> megacore split
            vmem_limit_bytes=vmem_limit_bytes,
        ),
    )(x, weight, b)

    # (N, m_slab) -> (B, S, N). The slice touches only the tiny [N, M] output
    # (~input traffic / H) and is the identity when tm divides M exactly.
    return out[:, :M].T.reshape(B, S, N)


if __name__ == "__main__":
    # config: hidden_size=32, num_labels=1 (typical value head), dropout ignored (eval)
    key = jax.random.PRNGKey(0)
    k_x, k_w, k_b, k_x2, k_x3, k_w3, k_b3 = jax.random.split(key, 7)

    B, S, H, N = 2, 8, 32, 1
    hidden_states = jax.random.normal(k_x, (B, S, H), dtype=jnp.float32)
    weight = jax.random.normal(k_w, (N, H), dtype=jnp.float32) * 0.05
    bias = jax.random.normal(k_b, (N,), dtype=jnp.float32) * 0.01

    out = value_head_forward(hidden_states, weight, bias)
    out = jax.block_until_ready(out)
    ref = jnp.tanh(hidden_states @ weight.T + bias)
    assert out.shape == (B, S, N)
    assert jnp.allclose(out, ref, atol=1e-5, rtol=1e-5)

    # tiny-M remainder path (M < one tile -> small row pad)
    B2, S2 = 3, 5
    hs2 = jax.random.normal(k_x2, (B2, S2, H), dtype=jnp.float32)
    out2 = jax.block_until_ready(value_head_forward(hs2, weight, bias))
    ref2 = jnp.tanh(hs2 @ weight.T + bias)
    assert out2.shape == (B2, S2, N)
    assert jnp.allclose(out2, ref2, atol=1e-5, rtol=1e-5)

    # ragged last-tile path (M > tm, tm does not divide M) + num_labels > 1
    B3, S3, N3 = 4, 50, 3
    hs3 = jax.random.normal(k_x3, (B3, S3, H), dtype=jnp.float32)
    w3 = jax.random.normal(k_w3, (N3, H), dtype=jnp.float32) * 0.05
    b3 = jax.random.normal(k_b3, (N3,), dtype=jnp.float32) * 0.01
    out3 = jax.block_until_ready(value_head_forward(hs3, w3, b3, tm=128))
    ref3 = jnp.tanh(hs3 @ w3.T + b3)
    assert out3.shape == (B3, S3, N3)
    assert jnp.allclose(out3, ref3, atol=1e-5, rtol=1e-5)

    print("KERNEL_OK")
</pallas_src>

<mosaic_0001>
module attributes {stable_mosaic.version = 11 : i64} {
  func.func @_value_head_kernel(%arg0: i32, %arg1: memref<128x32xf32, #tpu.memory_space<vmem>>, %arg2: memref<1x32xf32, #tpu.memory_space<vmem>>, %arg3: memref<1x1xf32, #tpu.memory_space<vmem>>, %arg4: memref<1x128xf32, #tpu.memory_space<vmem>>) attributes {dimension_semantics = [#tpu.dimension_semantics<parallel>], iteration_bounds = array<i64: 1>, scalar_prefetch = 0 : i64, scratch_operands = 0 : i64, tpu.core_type = #tpu.core_type<tc>, window_params = [{transform_indices = @transform_0, window_bounds = array<i64: 128, 32>}, {pipeline_mode = #tpu.pipeline_mode<synchronous>, transform_indices = @transform_1, window_bounds = array<i64: 1, 32>}, {pipeline_mode = #tpu.pipeline_mode<synchronous>, transform_indices = @transform_2, window_bounds = array<i64: 1, 1>}, {transform_indices = @transform_3, window_bounds = array<i64: 1, 128>}]} {
    %c0 = arith.constant 0 : index
    %c0_0 = arith.constant 0 : index
    %0 = vector.load %arg2[%c0, %c0_0] : memref<1x32xf32, #tpu.memory_space<vmem>>, vector<1x32xf32>
    %c0_1 = arith.constant 0 : index
    %c0_2 = arith.constant 0 : index
    %1 = vector.load %arg1[%c0_1, %c0_2] : memref<128x32xf32, #tpu.memory_space<vmem>>, vector<128x32xf32>
    %cst = arith.constant dense<0.000000e+00> : vector<1x128xf32>
    %2 = tpu.matmul %0, %1, %cst {dimension_numbers = #tpu.dot_dimension_numbers<[1], [1], [0], [0], [0, 0, 1, 0], [], []>} : vector<1x32xf32>, vector<128x32xf32>, vector<1x128xf32> -> vector<1x128xf32>
    %c0_3 = arith.constant 0 : index
    %c0_4 = arith.constant 0 : index
    %3 = vector.load %arg3[%c0_3, %c0_4] : memref<1x1xf32, #tpu.memory_space<vmem>>, vector<1x1xf32>
    %4 = vector.broadcast %3 : vector<1x1xf32> to vector<1x128xf32>
    %5 = arith.addf %2, %4 : vector<1x128xf32>
    %6 = math.tanh %5 : vector<1x128xf32>
    %c0_5 = arith.constant 0 : index
    %c0_6 = arith.constant 0 : index
    %7 = vector.load %arg4[%c0_5, %c0_6] : memref<1x128xf32, #tpu.memory_space<vmem>>, vector<1x128xf32>
    tpu.vector_store %arg4[%c0_5, %c0_6], %6 {strides = array<i32>} : memref<1x128xf32, #tpu.memory_space<vmem>>, vector<1x128xf32>,
    return
  }
  func.func @transform_0(%arg0: i32) -> (i32, i32) {
    %c0_i32 = arith.constant 0 : i32
    %c0_i32_0 = arith.constant 0 : i32
    return %arg0, %c0_i32 : i32, i32
  }
  func.func @transform_1(%arg0: i32) -> (i32, i32) {
    %c0_i32 = arith.constant 0 : i32
    %c0_i32_0 = arith.constant 0 : i32
    %c0_i32_1 = arith.constant 0 : i32
    return %c0_i32, %c0_i32_0 : i32, i32
  }
  func.func @transform_2(%arg0: i32) -> (i32, i32) {
    %c0_i32 = arith.constant 0 : i32
    %c0_i32_0 = arith.constant 0 : i32
    %c0_i32_1 = arith.constant 0 : i32
    return %c0_i32, %c0_i32_0 : i32, i32
  }
  func.func @transform_3(%arg0: i32) -> (i32, i32) {
    %c0_i32 = arith.constant 0 : i32
    %c0_i32_0 = arith.constant 0 : i32
    return %c0_i32, %arg0 : i32, i32
  }
}

</mosaic_0001>

<llo_original>
// kernel: tpu_custom_call.1
$region0: #{tpu_custom_call.1}
  #allocation0 [shape = 'u32[]', space=smem, size = 0x4, offset = 0x4, fixed_abs, tag = 'smem constant byte address 0x4 - core index']
  #allocation1 [shape = 'u32[144,128]{1,0:T(1,128)}', space=vmem, size = 0x12000, scoped, tag = 'internal scratch']
  #allocation2 [shape = 'f32[1,1]{1,0:T(1,128)S(1)}', space=vmem, size = 0x200, scoped, tag = 'scoped memory for tpu_custom_call.1']
  %s0 = inlined_call_operand.vmem [shape: f32[128,32], index: 0, kind: input, shape index: {}]
  %s1 = inlined_call_operand.vmem [shape: f32[1,32], index: 1, kind: input, shape index: {}]
  %s2 = inlined_call_operand.<no memory space> [shape: f32[1,1], index: 2, kind: input, shape index: {}]
  %s3 = inlined_call_operand.hbm [shape: f32[1,128], index: 3, kind: output, shape index: {}]
  %s4 = sld [smem:[#allocation0]]
  $region22: #{tpu_custom_call.1} parent=0
    _
  %s6 = ssub.s32 1, %s4
  %s7 = scalar_select 0, %s6, %s4
  %v8 = vstv %s2
  %9 = vst [vmem:[#allocation2] sm:$0x1] %v8
  $region1: #{tpu_custom_call.1} parent=0
    #allocation3 [shape = 'u8[512]{0}', space=vmem, size = 0x400, scoped, tag = 'output window, operand 0, single buffered']
    #allocation4 [shape = 's32[1]{0}', space=sflag, size = 0x4, scoped, tag = 'scoped memory for tpu_custom_call.1']
    %10 = vsyncpa [#allocation4], 0
    // Predicated region
    $region2: #{tpu_custom_call.1} parent=1 // pred_check
      _
    $region3: #{tpu_custom_call.1} parent=1 // pred_check_branch
      %12 = sbr.rel (0) target = $region5
    $region4: #{tpu_custom_call.1} parent=1 // pred_region
      _
    $region5: #{tpu_custom_call.1} parent=1 // pred_fallthru
      _
    // Predicated region
    $region6: #{tpu_custom_call.1} parent=1 // pred_check
      _
    $region7: #{tpu_custom_call.1} parent=1 // pred_check_branch
      %14 = sbr.rel (0) target = $region9
    $region8: #{tpu_custom_call.1} parent=1 // pred_region
      _
    $region9: #{tpu_custom_call.1} parent=1 // pred_fallthru
      _
    // Predicated region
    $region10: #{tpu_custom_call.1} parent=1 // pred_check
      _
    $region11: #{tpu_custom_call.1} parent=1 // pred_check_branch
      %16 = sbr.rel (0) target = $region13
    $region12: #{tpu_custom_call.1} parent=1 // pred_region
      _
    $region13: #{tpu_custom_call.1} parent=1 // pred_fallthru
      _
    %v17 = vld [vmem:[%s1] sm:$0x1]
    %v18 = vld [vmem:[%s0] sm:$0xff]
    %v19 = vld [vmem:[%s0 + $0x8] sm:$0xff]
    %v20 = vld [vmem:[%s0 + $0x10] sm:$0xff]
    %v21 = vld [vmem:[%s0 + $0x18] sm:$0xff]
    %v22 = vld [vmem:[%s0 + $0x20] sm:$0xff]
    %v23 = vld [vmem:[%s0 + $0x28] sm:$0xff]
    %v24 = vld [vmem:[%s0 + $0x30] sm:$0xff]
    %v25 = vld [vmem:[%s0 + $0x38] sm:$0xff]
    %v26 = vld [vmem:[%s0 + $0x40] sm:$0xff]
    %v27 = vld [vmem:[%s0 + $0x48] sm:$0xff]
    %v28 = vld [vmem:[%s0 + $0x50] sm:$0xff]
    %v29 = vld [vmem:[%s0 + $0x58] sm:$0xff]
    %v30 = vld [vmem:[%s0 + $0x60] sm:$0xff]
    %v31 = vld [vmem:[%s0 + $0x68] sm:$0xff]
    %v32 = vld [vmem:[%s0 + $0x70] sm:$0xff]
    %v33 = vld [vmem:[%s0 + $0x78] sm:$0xff]
    %v34 = vld [vmem:[#allocation2] sm:$0x1]
    %36 = vset.pattern.permute.xlu0 0
    %37 = vperm.xlu0 %36, %v34
    %v38 = vpop.permute.xlu0 %37
    %v40 = vlaneseq
    %v41 = vshrl.u32 %v40, 7
    %v42 = vsub.s32 0, %v41
    %v43 = vrot.slane %v38, %v42
    %vm44 = vcmask 261120
    %v46 = vsel %vm44, %v17, 0
    %v49 = vsel %vm44, %v18, 0
    %v52 = vsel %vm44, %v19, 0
    %v55 = vsel %vm44, %v20, 0
    %v58 = vsel %vm44, %v21, 0
    %v61 = vsel %vm44, %v22, 0
    %v64 = vsel %vm44, %v23, 0
    %v67 = vsel %vm44, %v24, 0
    %v70 = vsel %vm44, %v25, 0
    %v73 = vsel %vm44, %v26, 0
    %v76 = vsel %vm44, %v27, 0
    %v79 = vsel %vm44, %v28, 0
    %v82 = vsel %vm44, %v29, 0
    %v85 = vsel %vm44, %v30, 0
    %v88 = vsel %vm44, %v31, 0
    %v91 = vsel %vm44, %v32, 0
    %v94 = vsel %vm44, %v33, 0
    %96 = vmatprep.subr.mxu0 0.0
    %97 = vmatpush1.xpose.msra.mxu0 %v49
    %98 = vmatprep.subr.mxu0 0.0
    %99 = vmatpush1.xpose.msra.mxu0 %v52
    %100 = vmatprep.subr.mxu0 0.0
    %101 = vmatpush1.xpose.msra.mxu0 %v55
    %102 = vmatprep.subr.mxu0 0.0
    %103 = vmatpush1.xpose.msra.mxu0 %v58
    %104 = vmatprep.subr.mxu0 0.0
    %105 = vmatpush1.xpose.msra.mxu0 %v61
    %106 = vmatprep.subr.mxu0 0.0
    %107 = vmatpush1.xpose.msra.mxu0 %v64
    %108 = vmatprep.subr.mxu0 0.0
    %109 = vmatpush1.xpose.msra.mxu0 %v67
    %110 = vmatprep.subr.mxu0 0.0
    %111 = vmatpush1.xpose.msra.mxu0 %v70
    %112 = vmatprep.subr.mxu0 0.0
    %113 = vmatpush1.xpose.msra.mxu0 %v73
    %114 = vmatprep.subr.mxu0 0.0
    %115 = vmatpush1.xpose.msra.mxu0 %v76
    %116 = vmatprep.subr.mxu0 0.0
    %117 = vmatpush1.xpose.msra.mxu0 %v79
    %118 = vmatprep.subr.mxu0 0.0
    %119 = vmatpush1.xpose.msra.mxu0 %v82
    %120 = vmatprep.subr.mxu0 0.0
    %121 = vmatpush1.xpose.msra.mxu0 %v85
    %122 = vmatprep.subr.mxu0 0.0
    %123 = vmatpush1.xpose.msra.mxu0 %v88
    %124 = vmatprep.subr.mxu0 0.0
    %125 = vmatpush1.xpose.msra.mxu0 %v91
    %126 = vmatprep.subr.mxu0 0.0
    %127 = vmatpush1.xpose.msra.mxu0 %v94
    %128 = vmatprep.subr.mxu0 0.0
    %129 = vmatpush1.xpose.msra.mxu0 0.0
    %130 = vmatprep.subr.mxu0 0.0
    %131 = vmatpush1.xpose.msra.mxu0 0.0
    %132 = vmatprep.subr.mxu0 0.0
    %133 = vmatpush1.xpose.msra.mxu0 0.0
    %134 = vmatprep.subr.mxu0 0.0
    %135 = vmatpush1.xpose.msra.mxu0 0.0
    %136 = vmatprep.subr.mxu0 0.0
    %137 = vmatpush1.xpose.msra.mxu0 0.0
    %138 = vmatprep.subr.mxu0 0.0
    %139 = vmatpush1.xpose.msra.mxu0 0.0
    %140 = vmatprep.subr.mxu0 0.0
    %141 = vmatpush1.xpose.msra.mxu0 0.0
    %142 = vmatprep.subr.mxu0 0.0
    %143 = vmatpush1.xpose.msra.mxu0 0.0
    %144 = vmatprep.subr.mxu0 0.0
    %145 = vmatpush1.xpose.msra.mxu0 0.0
    %146 = vmatprep.subr.mxu0 0.0
    %147 = vmatpush1.xpose.msra.mxu0 0.0
    %148 = vmatprep.subr.mxu0 0.0
    %149 = vmatpush1.xpose.msra.mxu0 0.0
    %150 = vmatprep.subr.mxu0 0.0
    %151 = vmatpush1.xpose.msra.mxu0 0.0
    %152 = vmatprep.subr.mxu0 0.0
    %153 = vmatpush1.xpose.msra.mxu0 0.0
    %154 = vmatprep.subr.mxu0 0.0
    %155 = vmatpush1.xpose.msra.mxu0 0.0
    %156 = vmatprep.subr.mxu0 0.0
    %157 = vmatpush1.xpose.msra.mxu0 0.0
    %158 = vmatprep.subr.mxu0 0.0
    %159 = vmatpush1.xpose.msra.mxu0 0.0
    %160 = vmatprep.mubr.f32.mxu0 0.0
    %161 = vmatmul.mubr.f32.gmra.mrb[0].mxu0 %v46
    %v162 = vpop.f32.mrb[0].mxu0
    %v163 = vadd.f32 %v43, %v162
    %v164 = vpop.f32.mrb[0].mxu0
    %165 = vdwg.mxu0
    %v166 = vtanh.pop %v163
    %167 = vst [vmem:[#allocation3] sm:$0x1] %v166
    // Predicated region
    $region14: #{tpu_custom_call.1} parent=1 // pred_check
      _
    $region15: #{tpu_custom_call.1} parent=1 // pred_check_branch
      %169 = sbr.rel (0) target = $region17
    $region16: #{tpu_custom_call.1} parent=1 // pred_region
      %s171 = ssub.s32 16, 16
      %172 = vsyncadd [#allocation4], %s171
      %s174 = sshll.u32 [#allocation3], 4
      %s175 = int_to_ptr.vmem [resolvable:$true] %s174
      %177 = dma.vmem_to_hbm [thread:$0]  %s175, 16, %s3, [#allocation4]
    $region17: #{tpu_custom_call.1} parent=1 // pred_fallthru
      _
    // Predicated region
    $region18: #{tpu_custom_call.1} parent=1 // pred_check
      _
    $region19: #{tpu_custom_call.1} parent=1 // pred_check_branch
      %179 = sbr.rel (0) target = $region21
    $region20: #{tpu_custom_call.1} parent=1 // pred_region
      %180 = dma.done [#allocation4], 16
    $region21: #{tpu_custom_call.1} parent=1 // pred_fallthru
      _
    %181 = vsyncpa [#allocation4], 1

</llo_original>
